<compile_context>
chip_gen: v5e
topology: v5e:2x2
jax: 0.10.0
libtpu: 0.0.40
codegen_flags: <defaults>
</compile_context>

<pallas_src>
import math

import jax
import jax.numpy as jnp
import numpy as np
from jax.experimental import pallas as pl
from jax.experimental.pallas import tpu as pltpu

# ---- small model dims, consistent with BERT_Rel_Simple defaults -------------
B = 2            # batch
S = 8            # sequence length
D = 32           # bert_dim (synthetic small BERT hidden size)
H = 4            # attention heads
DH = D // H      # per-head dim
HID = 128        # hidden_dim (module default 300; config-settable, kept small)
C = 2            # n_classes
VOCAB = 256
SEP_TOKEN = 102  # the forward() hard-codes token id 102 for [SEP]
PACK = 128       # lane width of the packed output slab
PAD_B = 8        # output slab padded to a full (8,128) tile


# ---------------------------------------------------------------------------
# Fused kernel: QKV projection + per-(b,h) attention + CLS-attention reduction
#               + one-hot SEP gather + classification head with folded cls_att
#               placement.  Single grid point, lane-dense (8,128) output slab.
# ---------------------------------------------------------------------------
def _fused_kernel(sep_ref,        # (B,) int32   scalar prefetch (SMEM)
                  emb_ref,        # (B*S, D)     token embeddings
                  wattn_ref,      # (D, 4D)      [Wq/sqrt(DH) | Wk | Wv | Wo]
                  whid_ref,       # (D+1, HID)   [W1 ; b1]
                  whead_ref,      # (HID+S+1, PACK)  [W2_pad ; I_cls ; b2_pad]
                  out_ref):       # (PAD_B, PACK) packed output slab
    # One MXU push projects every row against the full (32,128) slab; the last
    # D output lanes (emb @ Wo) are unused filler -- cheaper than a
    # partial-lane weight load, and the weight operand stays one lane-dense
    # full tile.
    qkv = jnp.dot(emb_ref[...], wattn_ref[...],
                  preferred_element_type=jnp.float32)              # (B*S, 4D)
    wo = wattn_ref[:, 3 * D:4 * D]                                 # (D, D) static view

    rep_parts = []    # per-batch (S, D) attention outputs
    cls_parts = []    # per-batch (1, S) CLS attention rows summed over heads
    for b in range(B):                                             # static unroll (B=2)
        rows = slice(b * S, (b + 1) * S)
        q = qkv[rows, 0 * D:1 * D]
        k = qkv[rows, 1 * D:2 * D]
        v = qkv[rows, 2 * D:3 * D]

        ctx_parts = []
        cls_acc = jnp.zeros((1, S), jnp.float32)
        for h in range(H):                                         # static unroll (H=4)
            hs = slice(h * DH, (h + 1) * DH)
            # 1/sqrt(DH) is pre-folded into Wq at prepare time.
            scores = jnp.dot(q[:, hs], k[:, hs].T,
                             preferred_element_type=jnp.float32)   # (S, S)
            scores = scores - jnp.max(scores, axis=-1, keepdims=True)
            p = jnp.exp(scores)
            # EUP reciprocal (~2^-12 rel err), well inside the 5e-3 check on
            # v5e/v6e/v7x; v5e-paranoid fallback is approx=False (still EUP).
            inv = pl.reciprocal(jnp.sum(p, axis=-1, keepdims=True), approx=True)
            attn = p * inv                                         # (S, S)
            cls_acc = cls_acc + attn[0:1, :]                       # CLS query row
            ctx_parts.append(jnp.dot(attn, v[:, hs],
                                     preferred_element_type=jnp.float32))
        ctx = jnp.concatenate(ctx_parts, axis=1)                   # (S, D)
        # one (S,D)@(D,D) push instead of H per-head (S,DH)@(DH,D) pushes
        rep_parts.append(jnp.dot(ctx, wo, preferred_element_type=jnp.float32))
        cls_parts.append(cls_acc)

    rep = jnp.concatenate(rep_parts, axis=0)                       # (B*S, D)
    cls_all = jnp.concatenate(cls_parts, axis=0)                   # (B, S)

    # SEP gather for all batches with a single (B, B*S) one-hot matmul.
    col = jax.lax.broadcasted_iota(jnp.int32, (1, B * S), 1)
    onehot = jnp.concatenate(
        [(col == (sep_ref[b] + b * S)).astype(jnp.float32) for b in range(B)],
        axis=0)                                                    # (B, B*S)
    sep_rep = jnp.dot(onehot, rep, preferred_element_type=jnp.float32)   # (B, D)

    # SimpleHidden: Linear + ReLU  (weights/bias stacked in one slab)
    hid = jnp.dot(sep_rep, whid_ref[0:D, :],
                  preferred_element_type=jnp.float32) + whid_ref[D:D + 1, :]
    hid = jnp.maximum(hid, 0.0)                                    # (B, HID)

    # Classification head with cls_att placement folded into the weight slab:
    #   [hid | cls_all] @ [W2_pad ; I_cls] + b2_pad
    # -> lanes 0..S-1 hold cls_att, lanes S..S+C-1 hold the logits.
    feat = jnp.concatenate([hid, cls_all], axis=1)                 # (B, HID+S)
    feat = jnp.concatenate(
        [feat, jnp.zeros((PAD_B - B, HID + S), jnp.float32)], axis=0)   # (8, 136)
    out_ref[...] = (jnp.dot(feat, whead_ref[0:HID + S, :],
                            preferred_element_type=jnp.float32)
                    + whead_ref[HID + S:HID + S + 1, :])           # (8, 128)


# ---------------------------------------------------------------------------
# One-time weight fusion (NOT part of the per-call path).
# ---------------------------------------------------------------------------
def prepare_weights(params):
    wattn = jnp.concatenate(
        [params["wq"] * (1.0 / math.sqrt(DH)), params["wk"],
         params["wv"], params["wo"]], axis=1).astype(jnp.float32)        # (D, 4D)
    whid = jnp.concatenate([params["w1"], params["b1"]],
                           axis=0).astype(jnp.float32)                   # (D+1, HID)
    w2p = jnp.zeros((HID, PACK), jnp.float32).at[:, S:S + C].set(params["w2"])
    b2p = jnp.zeros((1, PACK), jnp.float32).at[:, S:S + C].set(params["b2"])
    eye_cls = jnp.eye(S, PACK, dtype=jnp.float32)   # routes cls_att -> lanes 0..S-1
    whead = jnp.concatenate([w2p, eye_cls, b2p], axis=0)                 # (HID+S+1, PACK)
    return {"emb_table": params["emb_table"].astype(jnp.float32),
            "w_attn": wattn, "w_hid": whid, "w_head": whead}


# ---------------------------------------------------------------------------
# Per-call forward: token-dependent glue + one pallas_call.
# ---------------------------------------------------------------------------
@jax.jit
def bert_rel_simple_forward(x_ids, prepared):
    # glue: embedding lookup flattened to (B*S, D)
    emb2d = jnp.take(prepared["emb_table"], x_ids, axis=0).reshape(B * S, D)
    # (x == 102).nonzero()[1] — assumes exactly one [SEP] per row like the torch
    # original; a row with no [SEP] silently maps to position 0.
    sep_idx = jnp.argmax((x_ids == SEP_TOKEN).astype(jnp.int32),
                         axis=1).astype(jnp.int32)

    packed = pl.pallas_call(
        _fused_kernel,
        out_shape=jax.ShapeDtypeStruct((PAD_B, PACK), jnp.float32),
        grid_spec=pltpu.PrefetchScalarGridSpec(
            num_scalar_prefetch=1,
            grid=(1,),           # whole problem fits one block
            in_specs=[
                pl.BlockSpec((B * S, D), lambda i, sep: (0, 0)),
                pl.BlockSpec((D, 4 * D), lambda i, sep: (0, 0)),
                pl.BlockSpec((D + 1, HID), lambda i, sep: (0, 0)),
                pl.BlockSpec((HID + S + 1, PACK), lambda i, sep: (0, 0)),
            ],
            out_specs=pl.BlockSpec((PAD_B, PACK), lambda i, sep: (0, 0)),
        ),
        # single grid point: nothing to shard across v7x's two TensorCores at
        # toy size; "arbitrary" is correct and a no-op on v5e/v6e.
        compiler_params=pltpu.CompilerParams(dimension_semantics=("arbitrary",)),
    )(sep_idx, emb2d, prepared["w_attn"], prepared["w_hid"], prepared["w_head"])

    return {"y_hat": packed[:B, S:S + C], "cls_att": packed[:B, :S]}


# ---------------------------------------------------------------------------
# Pure-JAX reference (same math) for a correctness check.
# ---------------------------------------------------------------------------
def _reference_forward(x_ids, params):
    emb = params["emb_table"][x_ids]
    q = emb @ params["wq"]
    k = emb @ params["wk"]
    v = emb @ params["wv"]
    qh = q.reshape(B, S, H, DH).transpose(0, 2, 1, 3)
    kh = k.reshape(B, S, H, DH).transpose(0, 2, 1, 3)
    vh = v.reshape(B, S, H, DH).transpose(0, 2, 1, 3)
    scores = jnp.einsum("bhqd,bhkd->bhqk", qh, kh) / math.sqrt(DH)
    attn = jax.nn.softmax(scores, axis=-1)
    ctx = jnp.einsum("bhqk,bhkd->bhqd", attn, vh).transpose(0, 2, 1, 3).reshape(B, S, D)
    rep = ctx @ params["wo"]
    cls_att = attn[:, :, 0, :].sum(axis=1)
    sep_idx = jnp.argmax(x_ids == SEP_TOKEN, axis=1)
    sep_rep = rep[jnp.arange(B), sep_idx]
    hid = jnp.maximum(sep_rep @ params["w1"] + params["b1"][0], 0.0)
    y_hat = hid @ params["w2"] + params["b2"][0]
    return {"y_hat": y_hat, "cls_att": cls_att}


def _init_params(key):
    ks = jax.random.split(key, 8)
    s = 0.2
    return {
        "emb_table": jax.random.normal(ks[0], (VOCAB, D), jnp.float32) * s,
        "wq": jax.random.normal(ks[1], (D, D), jnp.float32) * s,
        "wk": jax.random.normal(ks[2], (D, D), jnp.float32) * s,
        "wv": jax.random.normal(ks[3], (D, D), jnp.float32) * s,
        "wo": jax.random.normal(ks[4], (D, D), jnp.float32) * s,
        "w1": jax.random.normal(ks[5], (D, HID), jnp.float32) * s,
        "b1": jnp.zeros((1, HID), jnp.float32) + 0.01,
        "w2": jax.random.normal(ks[6], (HID, C), jnp.float32) * s,
        "b2": jnp.zeros((1, C), jnp.float32),
    }


if __name__ == "__main__":
    key = jax.random.PRNGKey(0)
    k_params, k_ids = jax.random.split(key)
    params = _init_params(k_params)
    prepared = jax.block_until_ready(prepare_weights(params))   # one-time fusion

    # deterministic token ids with exactly one [SEP]=102 per row
    x_ids = jax.random.randint(k_ids, (B, S), 0, VOCAB, dtype=jnp.int32)
    x_ids = jnp.where(x_ids == SEP_TOKEN, SEP_TOKEN + 1, x_ids)
    sep_positions = jnp.array([5, 3], dtype=jnp.int32)
    x_ids = x_ids.at[jnp.arange(B), sep_positions].set(SEP_TOKEN)

    out = jax.block_until_ready(bert_rel_simple_forward(x_ids, prepared))
    ref = jax.block_until_ready(_reference_forward(x_ids, params))

    # tolerance loosened slightly vs exact math because the kernel uses the
    # EUP approximate reciprocal for the softmax normalization.
    np.testing.assert_allclose(np.asarray(out["y_hat"]), np.asarray(ref["y_hat"]),
                               rtol=5e-3, atol=5e-3)
    np.testing.assert_allclose(np.asarray(out["cls_att"]), np.asarray(ref["cls_att"]),
                               rtol=5e-3, atol=5e-3)
    assert out["y_hat"].shape == (B, C) and out["cls_att"].shape == (B, S)
    print("KERNEL_OK")
</pallas_src>

<mosaic_0001>
module attributes {stable_mosaic.version = 11 : i64} {
  func.func @_fused_kernel(%arg0: i32, %arg1: memref<2xi32, #tpu.memory_space<smem>>, %arg2: memref<16x32xf32, #tpu.memory_space<vmem>>, %arg3: memref<32x128xf32, #tpu.memory_space<vmem>>, %arg4: memref<33x128xf32, #tpu.memory_space<vmem>>, %arg5: memref<137x128xf32, #tpu.memory_space<vmem>>, %arg6: memref<8x128xf32, #tpu.memory_space<vmem>>) attributes {dimension_semantics = [#tpu.dimension_semantics<arbitrary>], iteration_bounds = array<i64: 1>, scalar_prefetch = 1 : i64, scratch_operands = 0 : i64, tpu.core_type = #tpu.core_type<tc>, window_params = [{pipeline_mode = #tpu.pipeline_mode<synchronous>, transform_indices = @transform_0, window_bounds = array<i64: 16, 32>}, {pipeline_mode = #tpu.pipeline_mode<synchronous>, transform_indices = @transform_1, window_bounds = array<i64: 32, 128>}, {pipeline_mode = #tpu.pipeline_mode<synchronous>, transform_indices = @transform_2, window_bounds = array<i64: 33, 128>}, {pipeline_mode = #tpu.pipeline_mode<synchronous>, transform_indices = @transform_3, window_bounds = array<i64: 137, 128>}, {pipeline_mode = #tpu.pipeline_mode<synchronous>, transform_indices = @transform_4, window_bounds = array<i64: 8, 128>}]} {
    %c0 = arith.constant 0 : index
    %c0_0 = arith.constant 0 : index
    %0 = vector.load %arg2[%c0, %c0_0] : memref<16x32xf32, #tpu.memory_space<vmem>>, vector<16x32xf32>
    %c0_1 = arith.constant 0 : index
    %c0_2 = arith.constant 0 : index
    %1 = vector.load %arg3[%c0_1, %c0_2] : memref<32x128xf32, #tpu.memory_space<vmem>>, vector<32x128xf32>
    %cst = arith.constant dense<0.000000e+00> : vector<16x128xf32>
    %2 = tpu.matmul %0, %1, %cst {dimension_numbers = #tpu.dot_dimension_numbers<[1], [0], [0], [1], [0, 0, 1, 1], [], []>} : vector<16x32xf32>, vector<32x128xf32>, vector<16x128xf32> -> vector<16x128xf32>
    %c0_3 = arith.constant 0 : index
    %c96 = arith.constant 96 : index
    %3 = vector.load %arg3[%c0_3, %c96] : memref<32x128xf32, #tpu.memory_space<vmem>>, vector<32x32xf32>
    %4 = vector.extract_strided_slice %2 {offsets = [0, 0], sizes = [8, 32], strides = [1, 1]} : vector<16x128xf32> to vector<8x32xf32>
    %5 = vector.extract_strided_slice %2 {offsets = [0, 32], sizes = [8, 32], strides = [1, 1]} : vector<16x128xf32> to vector<8x32xf32>
    %6 = vector.extract_strided_slice %2 {offsets = [0, 64], sizes = [8, 32], strides = [1, 1]} : vector<16x128xf32> to vector<8x32xf32>
    %cst_4 = arith.constant 0.000000e+00 : f32
    %7 = vector.broadcast %cst_4 : f32 to vector<1x8xf32>
    %8 = vector.extract_strided_slice %4 {offsets = [0, 0], sizes = [8, 8], strides = [1, 1]} : vector<8x32xf32> to vector<8x8xf32>
    %9 = vector.extract_strided_slice %5 {offsets = [0, 0], sizes = [8, 8], strides = [1, 1]} : vector<8x32xf32> to vector<8x8xf32>
    %10 = tpu.transpose %9, [1, 0] : vector<8x8xf32> -> vector<8x8xf32>
    %cst_5 = arith.constant dense<0.000000e+00> : vector<8x8xf32>
    %11 = tpu.matmul %8, %10, %cst_5 {dimension_numbers = #tpu.dot_dimension_numbers<[1], [0], [0], [1], [0, 0, 1, 1], [], []>} : vector<8x8xf32>, vector<8x8xf32>, vector<8x8xf32> -> vector<8x8xf32>
    %cst_6 = arith.constant dense<0xFF800000> : vector<8xf32>
    %12 = vector.multi_reduction <maximumf>, %11, %cst_6 [1] : vector<8x8xf32> to vector<8xf32>
    %13 = vector.shape_cast %12 : vector<8xf32> to vector<8x1xf32>
    %14 = vector.broadcast %13 : vector<8x1xf32> to vector<8x8xf32>
    %15 = arith.subf %11, %14 : vector<8x8xf32>
    %16 = math.exp %15 : vector<8x8xf32>
    %cst_7 = arith.constant dense<0.000000e+00> : vector<8xf32>
    %17 = vector.multi_reduction <add>, %16, %cst_7 [1] : vector<8x8xf32> to vector<8xf32>
    %18 = vector.shape_cast %17 : vector<8xf32> to vector<8x1xf32>
    %19 = tpu.reciprocal %18 {approx = true} : vector<8x1xf32> -> vector<8x1xf32>
    %20 = vector.broadcast %19 : vector<8x1xf32> to vector<8x8xf32>
    %21 = arith.mulf %16, %20 : vector<8x8xf32>
    %22 = vector.extract_strided_slice %21 {offsets = [0, 0], sizes = [1, 8], strides = [1, 1]} : vector<8x8xf32> to vector<1x8xf32>
    %23 = arith.addf %7, %22 : vector<1x8xf32>
    %24 = vector.extract_strided_slice %6 {offsets = [0, 0], sizes = [8, 8], strides = [1, 1]} : vector<8x32xf32> to vector<8x8xf32>
    %cst_8 = arith.constant dense<0.000000e+00> : vector<8x8xf32>
    %25 = tpu.matmul %21, %24, %cst_8 {dimension_numbers = #tpu.dot_dimension_numbers<[1], [0], [0], [1], [0, 0, 1, 1], [], []>} : vector<8x8xf32>, vector<8x8xf32>, vector<8x8xf32> -> vector<8x8xf32>
    %26 = vector.extract_strided_slice %4 {offsets = [0, 8], sizes = [8, 8], strides = [1, 1]} : vector<8x32xf32> to vector<8x8xf32>
    %27 = vector.extract_strided_slice %5 {offsets = [0, 8], sizes = [8, 8], strides = [1, 1]} : vector<8x32xf32> to vector<8x8xf32>
    %28 = tpu.transpose %27, [1, 0] : vector<8x8xf32> -> vector<8x8xf32>
    %cst_9 = arith.constant dense<0.000000e+00> : vector<8x8xf32>
    %29 = tpu.matmul %26, %28, %cst_9 {dimension_numbers = #tpu.dot_dimension_numbers<[1], [0], [0], [1], [0, 0, 1, 1], [], []>} : vector<8x8xf32>, vector<8x8xf32>, vector<8x8xf32> -> vector<8x8xf32>
    %cst_10 = arith.constant dense<0xFF800000> : vector<8xf32>
    %30 = vector.multi_reduction <maximumf>, %29, %cst_10 [1] : vector<8x8xf32> to vector<8xf32>
    %31 = vector.shape_cast %30 : vector<8xf32> to vector<8x1xf32>
    %32 = vector.broadcast %31 : vector<8x1xf32> to vector<8x8xf32>
    %33 = arith.subf %29, %32 : vector<8x8xf32>
    %34 = math.exp %33 : vector<8x8xf32>
    %cst_11 = arith.constant dense<0.000000e+00> : vector<8xf32>
    %35 = vector.multi_reduction <add>, %34, %cst_11 [1] : vector<8x8xf32> to vector<8xf32>
    %36 = vector.shape_cast %35 : vector<8xf32> to vector<8x1xf32>
    %37 = tpu.reciprocal %36 {approx = true} : vector<8x1xf32> -> vector<8x1xf32>
    %38 = vector.broadcast %37 : vector<8x1xf32> to vector<8x8xf32>
    %39 = arith.mulf %34, %38 : vector<8x8xf32>
    %40 = vector.extract_strided_slice %39 {offsets = [0, 0], sizes = [1, 8], strides = [1, 1]} : vector<8x8xf32> to vector<1x8xf32>
    %41 = arith.addf %23, %40 : vector<1x8xf32>
    %42 = vector.extract_strided_slice %6 {offsets = [0, 8], sizes = [8, 8], strides = [1, 1]} : vector<8x32xf32> to vector<8x8xf32>
    %cst_12 = arith.constant dense<0.000000e+00> : vector<8x8xf32>
    %43 = tpu.matmul %39, %42, %cst_12 {dimension_numbers = #tpu.dot_dimension_numbers<[1], [0], [0], [1], [0, 0, 1, 1], [], []>} : vector<8x8xf32>, vector<8x8xf32>, vector<8x8xf32> -> vector<8x8xf32>
    %44 = vector.extract_strided_slice %4 {offsets = [0, 16], sizes = [8, 8], strides = [1, 1]} : vector<8x32xf32> to vector<8x8xf32>
    %45 = vector.extract_strided_slice %5 {offsets = [0, 16], sizes = [8, 8], strides = [1, 1]} : vector<8x32xf32> to vector<8x8xf32>
    %46 = tpu.transpose %45, [1, 0] : vector<8x8xf32> -> vector<8x8xf32>
    %cst_13 = arith.constant dense<0.000000e+00> : vector<8x8xf32>
    %47 = tpu.matmul %44, %46, %cst_13 {dimension_numbers = #tpu.dot_dimension_numbers<[1], [0], [0], [1], [0, 0, 1, 1], [], []>} : vector<8x8xf32>, vector<8x8xf32>, vector<8x8xf32> -> vector<8x8xf32>
    %cst_14 = arith.constant dense<0xFF800000> : vector<8xf32>
    %48 = vector.multi_reduction <maximumf>, %47, %cst_14 [1] : vector<8x8xf32> to vector<8xf32>
    %49 = vector.shape_cast %48 : vector<8xf32> to vector<8x1xf32>
    %50 = vector.broadcast %49 : vector<8x1xf32> to vector<8x8xf32>
    %51 = arith.subf %47, %50 : vector<8x8xf32>
    %52 = math.exp %51 : vector<8x8xf32>
    %cst_15 = arith.constant dense<0.000000e+00> : vector<8xf32>
    %53 = vector.multi_reduction <add>, %52, %cst_15 [1] : vector<8x8xf32> to vector<8xf32>
    %54 = vector.shape_cast %53 : vector<8xf32> to vector<8x1xf32>
    %55 = tpu.reciprocal %54 {approx = true} : vector<8x1xf32> -> vector<8x1xf32>
    %56 = vector.broadcast %55 : vector<8x1xf32> to vector<8x8xf32>
    %57 = arith.mulf %52, %56 : vector<8x8xf32>
    %58 = vector.extract_strided_slice %57 {offsets = [0, 0], sizes = [1, 8], strides = [1, 1]} : vector<8x8xf32> to vector<1x8xf32>
    %59 = arith.addf %41, %58 : vector<1x8xf32>
    %60 = vector.extract_strided_slice %6 {offsets = [0, 16], sizes = [8, 8], strides = [1, 1]} : vector<8x32xf32> to vector<8x8xf32>
    %cst_16 = arith.constant dense<0.000000e+00> : vector<8x8xf32>
    %61 = tpu.matmul %57, %60, %cst_16 {dimension_numbers = #tpu.dot_dimension_numbers<[1], [0], [0], [1], [0, 0, 1, 1], [], []>} : vector<8x8xf32>, vector<8x8xf32>, vector<8x8xf32> -> vector<8x8xf32>
    %62 = vector.extract_strided_slice %4 {offsets = [0, 24], sizes = [8, 8], strides = [1, 1]} : vector<8x32xf32> to vector<8x8xf32>
    %63 = vector.extract_strided_slice %5 {offsets = [0, 24], sizes = [8, 8], strides = [1, 1]} : vector<8x32xf32> to vector<8x8xf32>
    %64 = tpu.transpose %63, [1, 0] : vector<8x8xf32> -> vector<8x8xf32>
    %cst_17 = arith.constant dense<0.000000e+00> : vector<8x8xf32>
    %65 = tpu.matmul %62, %64, %cst_17 {dimension_numbers = #tpu.dot_dimension_numbers<[1], [0], [0], [1], [0, 0, 1, 1], [], []>} : vector<8x8xf32>, vector<8x8xf32>, vector<8x8xf32> -> vector<8x8xf32>
    %cst_18 = arith.constant dense<0xFF800000> : vector<8xf32>
    %66 = vector.multi_reduction <maximumf>, %65, %cst_18 [1] : vector<8x8xf32> to vector<8xf32>
    %67 = vector.shape_cast %66 : vector<8xf32> to vector<8x1xf32>
    %68 = vector.broadcast %67 : vector<8x1xf32> to vector<8x8xf32>
    %69 = arith.subf %65, %68 : vector<8x8xf32>
    %70 = math.exp %69 : vector<8x8xf32>
    %cst_19 = arith.constant dense<0.000000e+00> : vector<8xf32>
    %71 = vector.multi_reduction <add>, %70, %cst_19 [1] : vector<8x8xf32> to vector<8xf32>
    %72 = vector.shape_cast %71 : vector<8xf32> to vector<8x1xf32>
    %73 = tpu.reciprocal %72 {approx = true} : vector<8x1xf32> -> vector<8x1xf32>
    %74 = vector.broadcast %73 : vector<8x1xf32> to vector<8x8xf32>
    %75 = arith.mulf %70, %74 : vector<8x8xf32>
    %76 = vector.extract_strided_slice %75 {offsets = [0, 0], sizes = [1, 8], strides = [1, 1]} : vector<8x8xf32> to vector<1x8xf32>
    %77 = arith.addf %59, %76 : vector<1x8xf32>
    %78 = vector.extract_strided_slice %6 {offsets = [0, 24], sizes = [8, 8], strides = [1, 1]} : vector<8x32xf32> to vector<8x8xf32>
    %cst_20 = arith.constant dense<0.000000e+00> : vector<8x8xf32>
    %79 = tpu.matmul %75, %78, %cst_20 {dimension_numbers = #tpu.dot_dimension_numbers<[1], [0], [0], [1], [0, 0, 1, 1], [], []>} : vector<8x8xf32>, vector<8x8xf32>, vector<8x8xf32> -> vector<8x8xf32>
    %80 = tpu.concatenate %25, %43, %61, %79 in 1 : vector<8x8xf32>, vector<8x8xf32>, vector<8x8xf32>, vector<8x8xf32> -> vector<8x32xf32>
    %cst_21 = arith.constant dense<0.000000e+00> : vector<8x32xf32>
    %81 = tpu.matmul %80, %3, %cst_21 {dimension_numbers = #tpu.dot_dimension_numbers<[1], [0], [0], [1], [0, 0, 1, 1], [], []>} : vector<8x32xf32>, vector<32x32xf32>, vector<8x32xf32> -> vector<8x32xf32>
    %82 = vector.extract_strided_slice %2 {offsets = [8, 0], sizes = [8, 32], strides = [1, 1]} : vector<16x128xf32> to vector<8x32xf32>
    %83 = vector.extract_strided_slice %2 {offsets = [8, 32], sizes = [8, 32], strides = [1, 1]} : vector<16x128xf32> to vector<8x32xf32>
    %84 = vector.extract_strided_slice %2 {offsets = [8, 64], sizes = [8, 32], strides = [1, 1]} : vector<16x128xf32> to vector<8x32xf32>
    %cst_22 = arith.constant 0.000000e+00 : f32
    %85 = vector.broadcast %cst_22 : f32 to vector<1x8xf32>
    %86 = vector.extract_strided_slice %82 {offsets = [0, 0], sizes = [8, 8], strides = [1, 1]} : vector<8x32xf32> to vector<8x8xf32>
    %87 = vector.extract_strided_slice %83 {offsets = [0, 0], sizes = [8, 8], strides = [1, 1]} : vector<8x32xf32> to vector<8x8xf32>
    %88 = tpu.transpose %87, [1, 0] : vector<8x8xf32> -> vector<8x8xf32>
    %cst_23 = arith.constant dense<0.000000e+00> : vector<8x8xf32>
    %89 = tpu.matmul %86, %88, %cst_23 {dimension_numbers = #tpu.dot_dimension_numbers<[1], [0], [0], [1], [0, 0, 1, 1], [], []>} : vector<8x8xf32>, vector<8x8xf32>, vector<8x8xf32> -> vector<8x8xf32>
    %cst_24 = arith.constant dense<0xFF800000> : vector<8xf32>
    %90 = vector.multi_reduction <maximumf>, %89, %cst_24 [1] : vector<8x8xf32> to vector<8xf32>
    %91 = vector.shape_cast %90 : vector<8xf32> to vector<8x1xf32>
    %92 = vector.broadcast %91 : vector<8x1xf32> to vector<8x8xf32>
    %93 = arith.subf %89, %92 : vector<8x8xf32>
    %94 = math.exp %93 : vector<8x8xf32>
    %cst_25 = arith.constant dense<0.000000e+00> : vector<8xf32>
    %95 = vector.multi_reduction <add>, %94, %cst_25 [1] : vector<8x8xf32> to vector<8xf32>
    %96 = vector.shape_cast %95 : vector<8xf32> to vector<8x1xf32>
    %97 = tpu.reciprocal %96 {approx = true} : vector<8x1xf32> -> vector<8x1xf32>
    %98 = vector.broadcast %97 : vector<8x1xf32> to vector<8x8xf32>
    %99 = arith.mulf %94, %98 : vector<8x8xf32>
    %100 = vector.extract_strided_slice %99 {offsets = [0, 0], sizes = [1, 8], strides = [1, 1]} : vector<8x8xf32> to vector<1x8xf32>
    %101 = arith.addf %85, %100 : vector<1x8xf32>
    %102 = vector.extract_strided_slice %84 {offsets = [0, 0], sizes = [8, 8], strides = [1, 1]} : vector<8x32xf32> to vector<8x8xf32>
    %cst_26 = arith.constant dense<0.000000e+00> : vector<8x8xf32>
    %103 = tpu.matmul %99, %102, %cst_26 {dimension_numbers = #tpu.dot_dimension_numbers<[1], [0], [0], [1], [0, 0, 1, 1], [], []>} : vector<8x8xf32>, vector<8x8xf32>, vector<8x8xf32> -> vector<8x8xf32>
    %104 = vector.extract_strided_slice %82 {offsets = [0, 8], sizes = [8, 8], strides = [1, 1]} : vector<8x32xf32> to vector<8x8xf32>
    %105 = vector.extract_strided_slice %83 {offsets = [0, 8], sizes = [8, 8], strides = [1, 1]} : vector<8x32xf32> to vector<8x8xf32>
    %106 = tpu.transpose %105, [1, 0] : vector<8x8xf32> -> vector<8x8xf32>
    %cst_27 = arith.constant dense<0.000000e+00> : vector<8x8xf32>
    %107 = tpu.matmul %104, %106, %cst_27 {dimension_numbers = #tpu.dot_dimension_numbers<[1], [0], [0], [1], [0, 0, 1, 1], [], []>} : vector<8x8xf32>, vector<8x8xf32>, vector<8x8xf32> -> vector<8x8xf32>
    %cst_28 = arith.constant dense<0xFF800000> : vector<8xf32>
    %108 = vector.multi_reduction <maximumf>, %107, %cst_28 [1] : vector<8x8xf32> to vector<8xf32>
    %109 = vector.shape_cast %108 : vector<8xf32> to vector<8x1xf32>
    %110 = vector.broadcast %109 : vector<8x1xf32> to vector<8x8xf32>
    %111 = arith.subf %107, %110 : vector<8x8xf32>
    %112 = math.exp %111 : vector<8x8xf32>
    %cst_29 = arith.constant dense<0.000000e+00> : vector<8xf32>
    %113 = vector.multi_reduction <add>, %112, %cst_29 [1] : vector<8x8xf32> to vector<8xf32>
    %114 = vector.shape_cast %113 : vector<8xf32> to vector<8x1xf32>
    %115 = tpu.reciprocal %114 {approx = true} : vector<8x1xf32> -> vector<8x1xf32>
    %116 = vector.broadcast %115 : vector<8x1xf32> to vector<8x8xf32>
    %117 = arith.mulf %112, %116 : vector<8x8xf32>
    %118 = vector.extract_strided_slice %117 {offsets = [0, 0], sizes = [1, 8], strides = [1, 1]} : vector<8x8xf32> to vector<1x8xf32>
    %119 = arith.addf %101, %118 : vector<1x8xf32>
    %120 = vector.extract_strided_slice %84 {offsets = [0, 8], sizes = [8, 8], strides = [1, 1]} : vector<8x32xf32> to vector<8x8xf32>
    %cst_30 = arith.constant dense<0.000000e+00> : vector<8x8xf32>
    %121 = tpu.matmul %117, %120, %cst_30 {dimension_numbers = #tpu.dot_dimension_numbers<[1], [0], [0], [1], [0, 0, 1, 1], [], []>} : vector<8x8xf32>, vector<8x8xf32>, vector<8x8xf32> -> vector<8x8xf32>
    %122 = vector.extract_strided_slice %82 {offsets = [0, 16], sizes = [8, 8], strides = [1, 1]} : vector<8x32xf32> to vector<8x8xf32>
    %123 = vector.extract_strided_slice %83 {offsets = [0, 16], sizes = [8, 8], strides = [1, 1]} : vector<8x32xf32> to vector<8x8xf32>
    %124 = tpu.transpose %123, [1, 0] : vector<8x8xf32> -> vector<8x8xf32>
    %cst_31 = arith.constant dense<0.000000e+00> : vector<8x8xf32>
    %125 = tpu.matmul %122, %124, %cst_31 {dimension_numbers = #tpu.dot_dimension_numbers<[1], [0], [0], [1], [0, 0, 1, 1], [], []>} : vector<8x8xf32>, vector<8x8xf32>, vector<8x8xf32> -> vector<8x8xf32>
    %cst_32 = arith.constant dense<0xFF800000> : vector<8xf32>
    %126 = vector.multi_reduction <maximumf>, %125, %cst_32 [1] : vector<8x8xf32> to vector<8xf32>
    %127 = vector.shape_cast %126 : vector<8xf32> to vector<8x1xf32>
    %128 = vector.broadcast %127 : vector<8x1xf32> to vector<8x8xf32>
    %129 = arith.subf %125, %128 : vector<8x8xf32>
    %130 = math.exp %129 : vector<8x8xf32>
    %cst_33 = arith.constant dense<0.000000e+00> : vector<8xf32>
    %131 = vector.multi_reduction <add>, %130, %cst_33 [1] : vector<8x8xf32> to vector<8xf32>
    %132 = vector.shape_cast %131 : vector<8xf32> to vector<8x1xf32>
    %133 = tpu.reciprocal %132 {approx = true} : vector<8x1xf32> -> vector<8x1xf32>
    %134 = vector.broadcast %133 : vector<8x1xf32> to vector<8x8xf32>
    %135 = arith.mulf %130, %134 : vector<8x8xf32>
    %136 = vector.extract_strided_slice %135 {offsets = [0, 0], sizes = [1, 8], strides = [1, 1]} : vector<8x8xf32> to vector<1x8xf32>
    %137 = arith.addf %119, %136 : vector<1x8xf32>
    %138 = vector.extract_strided_slice %84 {offsets = [0, 16], sizes = [8, 8], strides = [1, 1]} : vector<8x32xf32> to vector<8x8xf32>
    %cst_34 = arith.constant dense<0.000000e+00> : vector<8x8xf32>
    %139 = tpu.matmul %135, %138, %cst_34 {dimension_numbers = #tpu.dot_dimension_numbers<[1], [0], [0], [1], [0, 0, 1, 1], [], []>} : vector<8x8xf32>, vector<8x8xf32>, vector<8x8xf32> -> vector<8x8xf32>
    %140 = vector.extract_strided_slice %82 {offsets = [0, 24], sizes = [8, 8], strides = [1, 1]} : vector<8x32xf32> to vector<8x8xf32>
    %141 = vector.extract_strided_slice %83 {offsets = [0, 24], sizes = [8, 8], strides = [1, 1]} : vector<8x32xf32> to vector<8x8xf32>
    %142 = tpu.transpose %141, [1, 0] : vector<8x8xf32> -> vector<8x8xf32>
    %cst_35 = arith.constant dense<0.000000e+00> : vector<8x8xf32>
    %143 = tpu.matmul %140, %142, %cst_35 {dimension_numbers = #tpu.dot_dimension_numbers<[1], [0], [0], [1], [0, 0, 1, 1], [], []>} : vector<8x8xf32>, vector<8x8xf32>, vector<8x8xf32> -> vector<8x8xf32>
    %cst_36 = arith.constant dense<0xFF800000> : vector<8xf32>
    %144 = vector.multi_reduction <maximumf>, %143, %cst_36 [1] : vector<8x8xf32> to vector<8xf32>
    %145 = vector.shape_cast %144 : vector<8xf32> to vector<8x1xf32>
    %146 = vector.broadcast %145 : vector<8x1xf32> to vector<8x8xf32>
    %147 = arith.subf %143, %146 : vector<8x8xf32>
    %148 = math.exp %147 : vector<8x8xf32>
    %cst_37 = arith.constant dense<0.000000e+00> : vector<8xf32>
    %149 = vector.multi_reduction <add>, %148, %cst_37 [1] : vector<8x8xf32> to vector<8xf32>
    %150 = vector.shape_cast %149 : vector<8xf32> to vector<8x1xf32>
    %151 = tpu.reciprocal %150 {approx = true} : vector<8x1xf32> -> vector<8x1xf32>
    %152 = vector.broadcast %151 : vector<8x1xf32> to vector<8x8xf32>
    %153 = arith.mulf %148, %152 : vector<8x8xf32>
    %154 = vector.extract_strided_slice %153 {offsets = [0, 0], sizes = [1, 8], strides = [1, 1]} : vector<8x8xf32> to vector<1x8xf32>
    %155 = arith.addf %137, %154 : vector<1x8xf32>
    %156 = vector.extract_strided_slice %84 {offsets = [0, 24], sizes = [8, 8], strides = [1, 1]} : vector<8x32xf32> to vector<8x8xf32>
    %cst_38 = arith.constant dense<0.000000e+00> : vector<8x8xf32>
    %157 = tpu.matmul %153, %156, %cst_38 {dimension_numbers = #tpu.dot_dimension_numbers<[1], [0], [0], [1], [0, 0, 1, 1], [], []>} : vector<8x8xf32>, vector<8x8xf32>, vector<8x8xf32> -> vector<8x8xf32>
    %158 = tpu.concatenate %103, %121, %139, %157 in 1 : vector<8x8xf32>, vector<8x8xf32>, vector<8x8xf32>, vector<8x8xf32> -> vector<8x32xf32>
    %cst_39 = arith.constant dense<0.000000e+00> : vector<8x32xf32>
    %159 = tpu.matmul %158, %3, %cst_39 {dimension_numbers = #tpu.dot_dimension_numbers<[1], [0], [0], [1], [0, 0, 1, 1], [], []>} : vector<8x32xf32>, vector<32x32xf32>, vector<8x32xf32> -> vector<8x32xf32>
    %160 = tpu.concatenate %81, %159 in 0 : vector<8x32xf32>, vector<8x32xf32> -> vector<16x32xf32>
    %161 = tpu.concatenate %77, %155 in 0 : vector<1x8xf32>, vector<1x8xf32> -> vector<2x8xf32>
    %162 = tpu.iota {dimensions = array<i32: 1>} : vector<1x16xi32>
    %c0_40 = arith.constant 0 : index
    %163 = memref.load %arg1[%c0_40] : memref<2xi32, #tpu.memory_space<smem>>
    %c0_i32 = arith.constant 0 : i32
    %164 = arith.addi %163, %c0_i32 : i32
    %165 = vector.broadcast %164 : i32 to vector<1x16xi32>
    %166 = arith.cmpi eq, %162, %165 : vector<1x16xi32>
    %167 = arith.extui %166 : vector<1x16xi1> to vector<1x16xi32>
    %168 = arith.sitofp %167 : vector<1x16xi32> to vector<1x16xf32>
    %c1 = arith.constant 1 : index
    %169 = memref.load %arg1[%c1] : memref<2xi32, #tpu.memory_space<smem>>
    %c8_i32 = arith.constant 8 : i32
    %170 = arith.addi %169, %c8_i32 : i32
    %171 = vector.broadcast %170 : i32 to vector<1x16xi32>
    %172 = arith.cmpi eq, %162, %171 : vector<1x16xi32>
    %173 = arith.extui %172 : vector<1x16xi1> to vector<1x16xi32>
    %174 = arith.sitofp %173 : vector<1x16xi32> to vector<1x16xf32>
    %175 = tpu.concatenate %168, %174 in 0 : vector<1x16xf32>, vector<1x16xf32> -> vector<2x16xf32>
    %cst_41 = arith.constant dense<0.000000e+00> : vector<2x32xf32>
    %176 = tpu.matmul %175, %160, %cst_41 {dimension_numbers = #tpu.dot_dimension_numbers<[1], [0], [0], [1], [0, 0, 1, 1], [], []>} : vector<2x16xf32>, vector<16x32xf32>, vector<2x32xf32> -> vector<2x32xf32>
    %c0_42 = arith.constant 0 : index
    %c0_43 = arith.constant 0 : index
    %177 = vector.load %arg4[%c0_42, %c0_43] : memref<33x128xf32, #tpu.memory_space<vmem>>, vector<32x128xf32>
    %cst_44 = arith.constant dense<0.000000e+00> : vector<2x128xf32>
    %178 = tpu.matmul %176, %177, %cst_44 {dimension_numbers = #tpu.dot_dimension_numbers<[1], [0], [0], [1], [0, 0, 1, 1], [], []>} : vector<2x32xf32>, vector<32x128xf32>, vector<2x128xf32> -> vector<2x128xf32>
    %c32 = arith.constant 32 : index
    %c0_45 = arith.constant 0 : index
    %179 = vector.load %arg4[%c32, %c0_45] : memref<33x128xf32, #tpu.memory_space<vmem>>, vector<1x128xf32>
    %180 = vector.broadcast %179 : vector<1x128xf32> to vector<2x128xf32>
    %181 = arith.addf %178, %180 : vector<2x128xf32>
    %cst_46 = arith.constant 0.000000e+00 : f32
    %182 = vector.broadcast %cst_46 : f32 to vector<2x128xf32>
    %183 = arith.maximumf %181, %182 : vector<2x128xf32>
    %184 = tpu.concatenate %183, %161 in 1 : vector<2x128xf32>, vector<2x8xf32> -> vector<2x136xf32>
    %cst_47 = arith.constant 0.000000e+00 : f32
    %185 = vector.broadcast %cst_47 : f32 to vector<6x136xf32>
    %186 = tpu.concatenate %184, %185 in 0 : vector<2x136xf32>, vector<6x136xf32> -> vector<8x136xf32>
    %c0_48 = arith.constant 0 : index
    %c0_49 = arith.constant 0 : index
    %187 = vector.load %arg5[%c0_48, %c0_49] : memref<137x128xf32, #tpu.memory_space<vmem>>, vector<136x128xf32>
    %cst_50 = arith.constant dense<0.000000e+00> : vector<8x128xf32>
    %188 = tpu.matmul %186, %187, %cst_50 {dimension_numbers = #tpu.dot_dimension_numbers<[1], [0], [0], [1], [0, 0, 1, 1], [], []>} : vector<8x136xf32>, vector<136x128xf32>, vector<8x128xf32> -> vector<8x128xf32>
    %c136 = arith.constant 136 : index
    %c0_51 = arith.constant 0 : index
    %189 = vector.load %arg5[%c136, %c0_51] : memref<137x128xf32, #tpu.memory_space<vmem>>, vector<1x128xf32>
    %190 = vector.broadcast %189 : vector<1x128xf32> to vector<8x128xf32>
    %191 = arith.addf %188, %190 : vector<8x128xf32>
    %c0_52 = arith.constant 0 : index
    %c0_53 = arith.constant 0 : index
    %192 = vector.load %arg6[%c0_52, %c0_53] : memref<8x128xf32, #tpu.memory_space<vmem>>, vector<8x128xf32>
    tpu.vector_store %arg6[%c0_52, %c0_53], %191 {strides = array<i32>} : memref<8x128xf32, #tpu.memory_space<vmem>>, vector<8x128xf32>,
    return
  }
  func.func @transform_0(%arg0: i32, %arg1: memref<2xi32, #tpu.memory_space<smem>>) -> (i32, i32) {
    %c0_i32 = arith.constant 0 : i32
    %c0_i32_0 = arith.constant 0 : i32
    %c0_i32_1 = arith.constant 0 : i32
    return %c0_i32, %c0_i32_0 : i32, i32
  }
  func.func @transform_1(%arg0: i32, %arg1: memref<2xi32, #tpu.memory_space<smem>>) -> (i32, i32) {
    %c0_i32 = arith.constant 0 : i32
    %c0_i32_0 = arith.constant 0 : i32
    %c0_i32_1 = arith.constant 0 : i32
    return %c0_i32, %c0_i32_0 : i32, i32
  }
  func.func @transform_2(%arg0: i32, %arg1: memref<2xi32, #tpu.memory_space<smem>>) -> (i32, i32) {
    %c0_i32 = arith.constant 0 : i32
    %c0_i32_0 = arith.constant 0 : i32
    %c0_i32_1 = arith.constant 0 : i32
    return %c0_i32, %c0_i32_0 : i32, i32
  }
  func.func @transform_3(%arg0: i32, %arg1: memref<2xi32, #tpu.memory_space<smem>>) -> (i32, i32) {
    %c0_i32 = arith.constant 0 : i32
    %c0_i32_0 = arith.constant 0 : i32
    %c0_i32_1 = arith.constant 0 : i32
    return %c0_i32, %c0_i32_0 : i32, i32
  }
  func.func @transform_4(%arg0: i32, %arg1: memref<2xi32, #tpu.memory_space<smem>>) -> (i32, i32) {
    %c0_i32 = arith.constant 0 : i32
    %c0_i32_0 = arith.constant 0 : i32
    %c0_i32_1 = arith.constant 0 : i32
    return %c0_i32, %c0_i32_0 : i32, i32
  }
}

</mosaic_0001>

<llo_original>
// kernel: bert_rel_simple_forward.1
$region0: #{bert_rel_simple_forward.1}
  #allocation0 [shape = 'u32[]', space=smem, size = 0x4, offset = 0x4, fixed_abs, tag = 'smem constant byte address 0x4 - core index']
  #allocation1 [shape = 'u32[72,128]{1,0:T(1,128)}', space=vmem, size = 0x9000, scoped, tag = 'internal scratch']
  #allocation2 [shape = 's32[1]{0}', space=sflag, size = 0x4, scoped, tag = 'scoped memory for bert_rel_simple_forward.1']
  #allocation3 [shape = 'u8[512]{0}', space=smem, size = 0x200, scoped, tag = 'prefetched SMEM operand 0']
  %s0 = inlined_call_operand.vmem [shape: s32[2], index: 0, kind: input, shape index: {}]
  %s1 = inlined_call_operand.vmem [shape: f32[16,32], index: 1, kind: input, shape index: {}]
  %s2 = inlined_call_operand.vmem [shape: f32[32,128], index: 2, kind: input, shape index: {}]
  %s3 = inlined_call_operand.vmem [shape: f32[33,128], index: 3, kind: input, shape index: {}]
  %s4 = inlined_call_operand.vmem [shape: f32[137,128], index: 4, kind: input, shape index: {}]
  %s5 = inlined_call_operand.vmem [shape: f32[8,128], index: 5, kind: output, shape index: {}]
  %s6 = sld [smem:[#allocation0]]
  $region26: #{bert_rel_simple_forward.1} parent=0
    _
  %s8 = ssub.s32 1, %s6
  %s9 = scalar_select 0, %s8, %s6
  %s11 = sshll.u32 %s0, 4
  %s12 = int_to_ptr.vmem [resolvable:$true] %s11
  %14 = dma.vmem_to_smem %s12, 16, [#allocation3], [#allocation2]
  %16 = dma.done [#allocation2], 16
  %17 = sfence
  // Predicated region
  $region2: #{bert_rel_simple_forward.1} parent=0 // pred_check
    _
  $region3: #{bert_rel_simple_forward.1} parent=0 // pred_check_branch
    %19 = sbr.rel (0) target = $region5
  $region4: #{bert_rel_simple_forward.1} parent=0 // pred_region
    _
  $region5: #{bert_rel_simple_forward.1} parent=0 // pred_fallthru
    _
  // Predicated region
  $region6: #{bert_rel_simple_forward.1} parent=0 // pred_check
    _
  $region7: #{bert_rel_simple_forward.1} parent=0 // pred_check_branch
    %21 = sbr.rel (0) target = $region9
  $region8: #{bert_rel_simple_forward.1} parent=0 // pred_region
    _
  $region9: #{bert_rel_simple_forward.1} parent=0 // pred_fallthru
    _
  // Predicated region
  $region10: #{bert_rel_simple_forward.1} parent=0 // pred_check
    _
  $region11: #{bert_rel_simple_forward.1} parent=0 // pred_check_branch
    %23 = sbr.rel (0) target = $region13
  $region12: #{bert_rel_simple_forward.1} parent=0 // pred_region
    _
  $region13: #{bert_rel_simple_forward.1} parent=0 // pred_fallthru
    _
  // Predicated region
  $region14: #{bert_rel_simple_forward.1} parent=0 // pred_check
    _
  $region15: #{bert_rel_simple_forward.1} parent=0 // pred_check_branch
    %25 = sbr.rel (0) target = $region17
  $region16: #{bert_rel_simple_forward.1} parent=0 // pred_region
    _
  $region17: #{bert_rel_simple_forward.1} parent=0 // pred_fallthru
    _
  %v26 = vld [vmem:[%s1] sm:$0xff]
  %v27 = vld [vmem:[%s1 + $0x8] sm:$0xff]
  %v28 = vld [vmem:[%s2] sm:$0xff]
  %v29 = vld [vmem:[%s2 + $0x8] sm:$0xff]
  %v30 = vld [vmem:[%s2 + $0x10] sm:$0xff]
  %v31 = vld [vmem:[%s2 + $0x18] sm:$0xff]
  %vm32 = vcmask 261120
  %v34 = vsel %vm32, %v26, 0
  %v37 = vsel %vm32, %v27, 0
  %39 = vmatpush.msra.mxu0 0.0
  %40 = vmatpush.msra.mxu0 0.0
  %41 = vmatpush.msra.mxu0 0.0
  %42 = vmatpush.msra.mxu0 0.0
  %43 = vmatpush.msra.mxu0 0.0
  %44 = vmatpush.msra.mxu0 0.0
  %45 = vmatpush.msra.mxu0 0.0
  %46 = vmatpush.msra.mxu0 0.0
  %47 = vmatpush.msra.mxu0 0.0
  %48 = vmatpush.msra.mxu0 0.0
  %49 = vmatpush.msra.mxu0 0.0
  %50 = vmatpush.msra.mxu0 0.0
  %51 = vmatpush.msra.mxu0 %v31
  %52 = vmatpush.msra.mxu0 %v30
  %53 = vmatpush.msra.mxu0 %v29
  %54 = vmatpush.msra.mxu0 %v28
  %55 = vmatmul.f32.gmra.mxu0 %v34
  %v56 = vpop.f32.mrf.mxu0
  %v57 = vadd.f32 0.0, %v56
  %58 = vmatmul.f32.gmra.mxu0 %v37
  %v59 = vpop.f32.mrf.mxu0
  %v60 = vadd.f32 0.0, %v59
  %61 = vdwg.mxu0
  %63 = vrot.lane.b32.xlu0 %v57, 96
  %v64 = vpop.permute.xlu0 %63
  %vm65 = vcmask 64512
  %v66 = vsel %vm65, %v57, 0
  %v68 = vsel %vm65, %v64, 0
  %70 = vmatpush.xpose.msra.mxu0 0.0
  %71 = vmatpush.xpose.msra.mxu0 0.0
  %72 = vmatpush.xpose.msra.mxu0 0.0
  %73 = vmatpush.xpose.msra.mxu0 0.0
  %74 = vmatpush.xpose.msra.mxu0 0.0
  %75 = vmatpush.xpose.msra.mxu0 0.0
  %76 = vmatpush.xpose.msra.mxu0 0.0
  %77 = vmatpush.xpose.msra.mxu0 0.0
  %78 = vmatpush.xpose.msra.mxu0 0.0
  %79 = vmatpush.xpose.msra.mxu0 0.0
  %80 = vmatpush.xpose.msra.mxu0 0.0
  %81 = vmatpush.xpose.msra.mxu0 0.0
  %82 = vmatpush.xpose.msra.mxu0 0.0
  %83 = vmatpush.xpose.msra.mxu0 0.0
  %84 = vmatpush.xpose.msra.mxu0 0.0
  %85 = vmatpush.xpose.msra.mxu0 %v68
  %86 = vmatmul.f32.gmra.mxu0 %v66
  %v87 = vpop.f32.mrf.mxu0
  %v88 = vadd.f32 0.0, %v87
  %89 = vdwg.mxu0
  %v90 = vsel %vm65, %v88, -inf
  %91 = vmax.xlane.f32.xlu0 %v90
  %v92 = vpop.xlane.xlu0 %91
  %v93 = vsub.f32 %v88, %v92
  %v94 = vmul.f32 %v93, 1.442695
  %v95 = vpow.pop %v94
  %v96 = vsel %vm65, %v95, 0.0
  %97 = vadd.xlane.f32.xlu0 %v96
  %v98 = vpop.xlane.xlu0 %97
  %v99 = vrcp.pop %v98
  %v100 = vmul.f32 %v95, %v99
  %v101 = vadd.f32 %v100, 0.0
  %102 = vrot.lane.b32.xlu0 %v57, 64
  %v103 = vpop.permute.xlu0 %102
  %v106 = vsel %vm65, %v100, 0
  %108 = vmatpush.msra.mxu0 0.0
  %109 = vmatpush.msra.mxu0 0.0
  %110 = vmatpush.msra.mxu0 0.0
  %111 = vmatpush.msra.mxu0 0.0
  %112 = vmatpush.msra.mxu0 0.0
  %113 = vmatpush.msra.mxu0 0.0
  %114 = vmatpush.msra.mxu0 0.0
  %115 = vmatpush.msra.mxu0 0.0
  %116 = vmatpush.msra.mxu0 0.0
  %117 = vmatpush.msra.mxu0 0.0
  %118 = vmatpush.msra.mxu0 0.0
  %119 = vmatpush.msra.mxu0 0.0
  %120 = vmatpush.msra.mxu0 0.0
  %121 = vmatpush.msra.mxu0 0.0
  %122 = vmatpush.msra.mxu0 0.0
  %123 = vmatpush.msra.mxu0 %v103
  %124 = vmatmul.f32.gmra.mxu0 %v106
  %v125 = vpop.f32.mrf.mxu0
  %v126 = vadd.f32 0.0, %v125
  %127 = vdwg.mxu0
  %128 = vrot.lane.b32.xlu0 %v57, 120
  %v129 = vpop.permute.xlu0 %128
  %130 = vrot.lane.b32.xlu0 %v57, 88
  %v131 = vpop.permute.xlu0 %130
  %v132 = vsel %vm65, %v129, 0
  %v134 = vsel %vm65, %v131, 0
  %136 = vmatpush.xpose.msra.mxu0 0.0
  %137 = vmatpush.xpose.msra.mxu0 0.0
  %138 = vmatpush.xpose.msra.mxu0 0.0
  %139 = vmatpush.xpose.msra.mxu0 0.0
  %140 = vmatpush.xpose.msra.mxu0 0.0
  %141 = vmatpush.xpose.msra.mxu0 0.0
  %142 = vmatpush.xpose.msra.mxu0 0.0
  %143 = vmatpush.xpose.msra.mxu0 0.0
  %144 = vmatpush.xpose.msra.mxu0 0.0
  %145 = vmatpush.xpose.msra.mxu0 0.0
  %146 = vmatpush.xpose.msra.mxu0 0.0
  %147 = vmatpush.xpose.msra.mxu0 0.0
  %148 = vmatpush.xpose.msra.mxu0 0.0
  %149 = vmatpush.xpose.msra.mxu0 0.0
  %150 = vmatpush.xpose.msra.mxu0 0.0
  %151 = vmatpush.xpose.msra.mxu0 %v134
  %152 = vmatmul.f32.gmra.mxu0 %v132
  %v153 = vpop.f32.mrf.mxu0
  %v154 = vadd.f32 0.0, %v153
  %155 = vdwg.mxu0
  %v156 = vsel %vm65, %v154, -inf
  %157 = vmax.xlane.f32.xlu0 %v156
  %v158 = vpop.xlane.xlu0 %157
  %v159 = vsub.f32 %v154, %v158
  %v160 = vmul.f32 %v159, 1.442695
  %v161 = vpow.pop %v160
  %v162 = vsel %vm65, %v161, 0.0
  %163 = vadd.xlane.f32.xlu0 %v162
  %v164 = vpop.xlane.xlu0 %163
  %v165 = vrcp.pop %v164
  %v166 = vmul.f32 %v161, %v165
  %v167 = vadd.f32 %v101, %v166
  %168 = vrot.lane.b32.xlu0 %v57, 56
  %v169 = vpop.permute.xlu0 %168
  %v172 = vsel %vm65, %v166, 0
  %174 = vmatpush.msra.mxu0 0.0
  %175 = vmatpush.msra.mxu0 0.0
  %176 = vmatpush.msra.mxu0 0.0
  %177 = vmatpush.msra.mxu0 0.0
  %178 = vmatpush.msra.mxu0 0.0
  %179 = vmatpush.msra.mxu0 0.0
  %180 = vmatpush.msra.mxu0 0.0
  %181 = vmatpush.msra.mxu0 0.0
  %182 = vmatpush.msra.mxu0 0.0
  %183 = vmatpush.msra.mxu0 0.0
  %184 = vmatpush.msra.mxu0 0.0
  %185 = vmatpush.msra.mxu0 0.0
  %186 = vmatpush.msra.mxu0 0.0
  %187 = vmatpush.msra.mxu0 0.0
  %188 = vmatpush.msra.mxu0 0.0
  %189 = vmatpush.msra.mxu0 %v169
  %190 = vmatmul.f32.gmra.mxu0 %v172
  %v191 = vpop.f32.mrf.mxu0
  %v192 = vadd.f32 0.0, %v191
  %193 = vdwg.mxu0
  %194 = vrot.lane.b32.xlu0 %v57, 112
  %v195 = vpop.permute.xlu0 %194
  %196 = vrot.lane.b32.xlu0 %v57, 80
  %v197 = vpop.permute.xlu0 %196
  %v198 = vsel %vm65, %v195, 0
  %v200 = vsel %vm65, %v197, 0
  %202 = vmatpush.xpose.msra.mxu0 0.0
  %203 = vmatpush.xpose.msra.mxu0 0.0
  %204 = vmatpush.xpose.msra.mxu0 0.0
  %205 = vmatpush.xpose.msra.mxu0 0.0
  %206 = vmatpush.xpose.msra.mxu0 0.0
  %207 = vmatpush.xpose.msra.mxu0 0.0
  %208 = vmatpush.xpose.msra.mxu0 0.0
  %209 = vmatpush.xpose.msra.mxu0 0.0
  %210 = vmatpush.xpose.msra.mxu0 0.0
  %211 = vmatpush.xpose.msra.mxu0 0.0
  %212 = vmatpush.xpose.msra.mxu0 0.0
  %213 = vmatpush.xpose.msra.mxu0 0.0
  %214 = vmatpush.xpose.msra.mxu0 0.0
  %215 = vmatpush.xpose.msra.mxu0 0.0
  %216 = vmatpush.xpose.msra.mxu0 0.0
  %217 = vmatpush.xpose.msra.mxu0 %v200
  %218 = vmatmul.f32.gmra.mxu0 %v198
  %v219 = vpop.f32.mrf.mxu0
  %v220 = vadd.f32 0.0, %v219
  %221 = vdwg.mxu0
  %v222 = vsel %vm65, %v220, -inf
  %223 = vmax.xlane.f32.xlu0 %v222
  %v224 = vpop.xlane.xlu0 %223
  %v225 = vsub.f32 %v220, %v224
  %v226 = vmul.f32 %v225, 1.442695
  %v227 = vpow.pop %v226
  %v228 = vsel %vm65, %v227, 0.0
  %229 = vadd.xlane.f32.xlu0 %v228
  %v230 = vpop.xlane.xlu0 %229
  %v231 = vrcp.pop %v230
  %v232 = vmul.f32 %v227, %v231
  %v233 = vadd.f32 %v167, %v232
  %234 = vrot.lane.b32.xlu0 %v57, 48
  %v235 = vpop.permute.xlu0 %234
  %v238 = vsel %vm65, %v232, 0
  %240 = vmatpush.msra.mxu0 0.0
  %241 = vmatpush.msra.mxu0 0.0
  %242 = vmatpush.msra.mxu0 0.0
  %243 = vmatpush.msra.mxu0 0.0
  %244 = vmatpush.msra.mxu0 0.0
  %245 = vmatpush.msra.mxu0 0.0
  %246 = vmatpush.msra.mxu0 0.0
  %247 = vmatpush.msra.mxu0 0.0
  %248 = vmatpush.msra.mxu0 0.0
  %249 = vmatpush.msra.mxu0 0.0
  %250 = vmatpush.msra.mxu0 0.0
  %251 = vmatpush.msra.mxu0 0.0
  %252 = vmatpush.msra.mxu0 0.0
  %253 = vmatpush.msra.mxu0 0.0
  %254 = vmatpush.msra.mxu0 0.0
  %255 = vmatpush.msra.mxu0 %v235
  %256 = vmatmul.f32.gmra.mxu0 %v238
  %v257 = vpop.f32.mrf.mxu0
  %v258 = vadd.f32 0.0, %v257
  %259 = vdwg.mxu0
  %260 = vrot.lane.b32.xlu0 %v57, 104
  %v261 = vpop.permute.xlu0 %260
  %262 = vrot.lane.b32.xlu0 %v57, 72
  %v263 = vpop.permute.xlu0 %262
  %v264 = vsel %vm65, %v261, 0
  %v266 = vsel %vm65, %v263, 0
  %268 = vmatpush.xpose.msra.mxu0 0.0
  %269 = vmatpush.xpose.msra.mxu0 0.0
  %270 = vmatpush.xpose.msra.mxu0 0.0
  %271 = vmatpush.xpose.msra.mxu0 0.0
  %272 = vmatpush.xpose.msra.mxu0 0.0
  %273 = vmatpush.xpose.msra.mxu0 0.0
  %274 = vmatpush.xpose.msra.mxu0 0.0
  %275 = vmatpush.xpose.msra.mxu0 0.0
  %276 = vmatpush.xpose.msra.mxu0 0.0
  %277 = vmatpush.xpose.msra.mxu0 0.0
  %278 = vmatpush.xpose.msra.mxu0 0.0
  %279 = vmatpush.xpose.msra.mxu0 0.0
  %280 = vmatpush.xpose.msra.mxu0 0.0
  %281 = vmatpush.xpose.msra.mxu0 0.0
  %282 = vmatpush.xpose.msra.mxu0 0.0
  %283 = vmatpush.xpose.msra.mxu0 %v266
  %284 = vmatmul.f32.gmra.mxu0 %v264
  %v285 = vpop.f32.mrf.mxu0
  %v286 = vadd.f32 0.0, %v285
  %287 = vdwg.mxu0
  %v288 = vsel %vm65, %v286, -inf
  %289 = vmax.xlane.f32.xlu0 %v288
  %v290 = vpop.xlane.xlu0 %289
  %v291 = vsub.f32 %v286, %v290
  %v292 = vmul.f32 %v291, 1.442695
  %v293 = vpow.pop %v292
  %v294 = vsel %vm65, %v293, 0.0
  %295 = vadd.xlane.f32.xlu0 %v294
  %v296 = vpop.xlane.xlu0 %295
  %v297 = vrcp.pop %v296
  %v298 = vmul.f32 %v293, %v297
  %v299 = vadd.f32 %v233, %v298
  %300 = vrot.lane.b32.xlu0 %v57, 40
  %v301 = vpop.permute.xlu0 %300
  %v304 = vsel %vm65, %v298, 0
  %306 = vmatpush.msra.mxu0 0.0
  %307 = vmatpush.msra.mxu0 0.0
  %308 = vmatpush.msra.mxu0 0.0
  %309 = vmatpush.msra.mxu0 0.0
  %310 = vmatpush.msra.mxu0 0.0
  %311 = vmatpush.msra.mxu0 0.0
  %312 = vmatpush.msra.mxu0 0.0
  %313 = vmatpush.msra.mxu0 0.0
  %314 = vmatpush.msra.mxu0 0.0
  %315 = vmatpush.msra.mxu0 0.0
  %316 = vmatpush.msra.mxu0 0.0
  %317 = vmatpush.msra.mxu0 0.0
  %318 = vmatpush.msra.mxu0 0.0
  %319 = vmatpush.msra.mxu0 0.0
  %320 = vmatpush.msra.mxu0 0.0
  %321 = vmatpush.msra.mxu0 %v301
  %322 = vmatmul.f32.gmra.mxu0 %v304
  %v323 = vpop.f32.mrf.mxu0
  %v324 = vadd.f32 0.0, %v323
  %325 = vdwg.mxu0
  %327 = vrot.lane.b32.xlu0 %v192, 8
  %v328 = vpop.permute.xlu0 %327
  %331 = vrot.lane.b32.xlu0 %v258, 16
  %v332 = vpop.permute.xlu0 %331
  %335 = vrot.lane.b32.xlu0 %v324, 24
  %v336 = vpop.permute.xlu0 %335
  %v338 = vsel %vm65, %v126, %v328
  %vm339 = vcmask 130048
  %v340 = vsel %vm339, %v338, %v332
  %vm341 = vcmask 195584
  %v342 = vsel %vm341, %v340, %v336
  %347 = vrot.lane.b32.xlu0 %v28, 32
  %v348 = vpop.permute.xlu0 %347
  %349 = vrot.lane.b32.xlu0 %v29, 32
  %v350 = vpop.permute.xlu0 %349
  %351 = vrot.lane.b32.xlu0 %v30, 32
  %v352 = vpop.permute.xlu0 %351
  %353 = vrot.lane.b32.xlu0 %v31, 32
  %v354 = vpop.permute.xlu0 %353
  %v360 = vsel %vm32, %v342, 0
  %362 = vmatpush.msra.mxu0 0.0
  %363 = vmatpush.msra.mxu0 0.0
  %364 = vmatpush.msra.mxu0 0.0
  %365 = vmatpush.msra.mxu0 0.0
  %366 = vmatpush.msra.mxu0 0.0
  %367 = vmatpush.msra.mxu0 0.0
  %368 = vmatpush.msra.mxu0 0.0
  %369 = vmatpush.msra.mxu0 0.0
  %370 = vmatpush.msra.mxu0 0.0
  %371 = vmatpush.msra.mxu0 0.0
  %372 = vmatpush.msra.mxu0 0.0
  %373 = vmatpush.msra.mxu0 0.0
  %374 = vmatpush.msra.mxu0 %v354
  %375 = vmatpush.msra.mxu0 %v352
  %376 = vmatpush.msra.mxu0 %v350
  %377 = vmatpush.msra.mxu0 %v348
  %378 = vmatmul.f32.gmra.mxu0 %v360
  %v379 = vpop.f32.mrf.mxu0
  %v380 = vadd.f32 0.0, %v379
  %381 = vdwg.mxu0
  %383 = vrot.lane.b32.xlu0 %v60, 96
  %v384 = vpop.permute.xlu0 %383
  %v385 = vsel %vm65, %v60, 0
  %v387 = vsel %vm65, %v384, 0
  %389 = vmatpush.xpose.msra.mxu0 0.0
  %390 = vmatpush.xpose.msra.mxu0 0.0
  %391 = vmatpush.xpose.msra.mxu0 0.0
  %392 = vmatpush.xpose.msra.mxu0 0.0
  %393 = vmatpush.xpose.msra.mxu0 0.0
  %394 = vmatpush.xpose.msra.mxu0 0.0
  %395 = vmatpush.xpose.msra.mxu0 0.0
  %396 = vmatpush.xpose.msra.mxu0 0.0
  %397 = vmatpush.xpose.msra.mxu0 0.0
  %398 = vmatpush.xpose.msra.mxu0 0.0
  %399 = vmatpush.xpose.msra.mxu0 0.0
  %400 = vmatpush.xpose.msra.mxu0 0.0
  %401 = vmatpush.xpose.msra.mxu0 0.0
  %402 = vmatpush.xpose.msra.mxu0 0.0
  %403 = vmatpush.xpose.msra.mxu0 0.0
  %404 = vmatpush.xpose.msra.mxu0 %v387
  %405 = vmatmul.f32.gmra.mxu0 %v385
  %v406 = vpop.f32.mrf.mxu0
  %v407 = vadd.f32 0.0, %v406
  %408 = vdwg.mxu0
  %v409 = vsel %vm65, %v407, -inf
  %410 = vmax.xlane.f32.xlu0 %v409
  %v411 = vpop.xlane.xlu0 %410
  %v412 = vsub.f32 %v407, %v411
  %v413 = vmul.f32 %v412, 1.442695
  %v414 = vpow.pop %v413
  %v415 = vsel %vm65, %v414, 0.0
  %416 = vadd.xlane.f32.xlu0 %v415
  %v417 = vpop.xlane.xlu0 %416
  %v418 = vrcp.pop %v417
  %v419 = vmul.f32 %v414, %v418
  %v420 = vadd.f32 %v419, 0.0
  %421 = vrot.lane.b32.xlu0 %v60, 64
  %v422 = vpop.permute.xlu0 %421
  %v425 = vsel %vm65, %v419, 0
  %427 = vmatpush.msra.mxu0 0.0
  %428 = vmatpush.msra.mxu0 0.0
  %429 = vmatpush.msra.mxu0 0.0
  %430 = vmatpush.msra.mxu0 0.0
  %431 = vmatpush.msra.mxu0 0.0
  %432 = vmatpush.msra.mxu0 0.0
  %433 = vmatpush.msra.mxu0 0.0
  %434 = vmatpush.msra.mxu0 0.0
  %435 = vmatpush.msra.mxu0 0.0
  %436 = vmatpush.msra.mxu0 0.0
  %437 = vmatpush.msra.mxu0 0.0
  %438 = vmatpush.msra.mxu0 0.0
  %439 = vmatpush.msra.mxu0 0.0
  %440 = vmatpush.msra.mxu0 0.0
  %441 = vmatpush.msra.mxu0 0.0
  %442 = vmatpush.msra.mxu0 %v422
  %443 = vmatmul.f32.gmra.mxu0 %v425
  %v444 = vpop.f32.mrf.mxu0
  %v445 = vadd.f32 0.0, %v444
  %446 = vdwg.mxu0
  %447 = vrot.lane.b32.xlu0 %v60, 120
  %v448 = vpop.permute.xlu0 %447
  %449 = vrot.lane.b32.xlu0 %v60, 88
  %v450 = vpop.permute.xlu0 %449
  %v451 = vsel %vm65, %v448, 0
  %v453 = vsel %vm65, %v450, 0
  %455 = vmatpush.xpose.msra.mxu0 0.0
  %456 = vmatpush.xpose.msra.mxu0 0.0
  %457 = vmatpush.xpose.msra.mxu0 0.0
  %458 = vmatpush.xpose.msra.mxu0 0.0
  %459 = vmatpush.xpose.msra.mxu0 0.0
  %460 = vmatpush.xpose.msra.mxu0 0.0
  %461 = vmatpush.xpose.msra.mxu0 0.0
  %462 = vmatpush.xpose.msra.mxu0 0.0
  %463 = vmatpush.xpose.msra.mxu0 0.0
  %464 = vmatpush.xpose.msra.mxu0 0.0
  %465 = vmatpush.xpose.msra.mxu0 0.0
  %466 = vmatpush.xpose.msra.mxu0 0.0
  %467 = vmatpush.xpose.msra.mxu0 0.0
  %468 = vmatpush.xpose.msra.mxu0 0.0
  %469 = vmatpush.xpose.msra.mxu0 0.0
  %470 = vmatpush.xpose.msra.mxu0 %v453
  %471 = vmatmul.f32.gmra.mxu0 %v451
  %v472 = vpop.f32.mrf.mxu0
  %v473 = vadd.f32 0.0, %v472
  %474 = vdwg.mxu0
  %v475 = vsel %vm65, %v473, -inf
  %476 = vmax.xlane.f32.xlu0 %v475
  %v477 = vpop.xlane.xlu0 %476
  %v478 = vsub.f32 %v473, %v477
  %v479 = vmul.f32 %v478, 1.442695
  %v480 = vpow.pop %v479
  %v481 = vsel %vm65, %v480, 0.0
  %482 = vadd.xlane.f32.xlu0 %v481
  %v483 = vpop.xlane.xlu0 %482
  %v484 = vrcp.pop %v483
  %v485 = vmul.f32 %v480, %v484
  %v486 = vadd.f32 %v420, %v485
  %487 = vrot.lane.b32.xlu0 %v60, 56
  %v488 = vpop.permute.xlu0 %487
  %v491 = vsel %vm65, %v485, 0
  %493 = vmatpush.msra.mxu0 0.0
  %494 = vmatpush.msra.mxu0 0.0
  %495 = vmatpush.msra.mxu0 0.0
  %496 = vmatpush.msra.mxu0 0.0
  %497 = vmatpush.msra.mxu0 0.0
  %498 = vmatpush.msra.mxu0 0.0
  %499 = vmatpush.msra.mxu0 0.0
  %500 = vmatpush.msra.mxu0 0.0
  %501 = vmatpush.msra.mxu0 0.0
  %502 = vmatpush.msra.mxu0 0.0
  %503 = vmatpush.msra.mxu0 0.0
  %504 = vmatpush.msra.mxu0 0.0
  %505 = vmatpush.msra.mxu0 0.0
  %506 = vmatpush.msra.mxu0 0.0
  %507 = vmatpush.msra.mxu0 0.0
  %508 = vmatpush.msra.mxu0 %v488
  %509 = vmatmul.f32.gmra.mxu0 %v491
  %v510 = vpop.f32.mrf.mxu0
  %v511 = vadd.f32 0.0, %v510
  %512 = vdwg.mxu0
  %513 = vrot.lane.b32.xlu0 %v60, 112
  %v514 = vpop.permute.xlu0 %513
  %515 = vrot.lane.b32.xlu0 %v60, 80
  %v516 = vpop.permute.xlu0 %515
  %v517 = vsel %vm65, %v514, 0
  %v519 = vsel %vm65, %v516, 0
  %521 = vmatpush.xpose.msra.mxu0 0.0
  %522 = vmatpush.xpose.msra.mxu0 0.0
  %523 = vmatpush.xpose.msra.mxu0 0.0
  %524 = vmatpush.xpose.msra.mxu0 0.0
  %525 = vmatpush.xpose.msra.mxu0 0.0
  %526 = vmatpush.xpose.msra.mxu0 0.0
  %527 = vmatpush.xpose.msra.mxu0 0.0
  %528 = vmatpush.xpose.msra.mxu0 0.0
  %529 = vmatpush.xpose.msra.mxu0 0.0
  %530 = vmatpush.xpose.msra.mxu0 0.0
  %531 = vmatpush.xpose.msra.mxu0 0.0
  %532 = vmatpush.xpose.msra.mxu0 0.0
  %533 = vmatpush.xpose.msra.mxu0 0.0
  %534 = vmatpush.xpose.msra.mxu0 0.0
  %535 = vmatpush.xpose.msra.mxu0 0.0
  %536 = vmatpush.xpose.msra.mxu0 %v519
  %537 = vmatmul.f32.gmra.mxu0 %v517
  %v538 = vpop.f32.mrf.mxu0
  %v539 = vadd.f32 0.0, %v538
  %540 = vdwg.mxu0
  %v541 = vsel %vm65, %v539, -inf
  %542 = vmax.xlane.f32.xlu0 %v541
  %v543 = vpop.xlane.xlu0 %542
  %v544 = vsub.f32 %v539, %v543
  %v545 = vmul.f32 %v544, 1.442695
  %v546 = vpow.pop %v545
  %v547 = vsel %vm65, %v546, 0.0
  %548 = vadd.xlane.f32.xlu0 %v547
  %v549 = vpop.xlane.xlu0 %548
  %v550 = vrcp.pop %v549
  %v551 = vmul.f32 %v546, %v550
  %v552 = vadd.f32 %v486, %v551
  %553 = vrot.lane.b32.xlu0 %v60, 48
  %v554 = vpop.permute.xlu0 %553
  %v557 = vsel %vm65, %v551, 0
  %559 = vmatpush.msra.mxu0 0.0
  %560 = vmatpush.msra.mxu0 0.0
  %561 = vmatpush.msra.mxu0 0.0
  %562 = vmatpush.msra.mxu0 0.0
  %563 = vmatpush.msra.mxu0 0.0
  %564 = vmatpush.msra.mxu0 0.0
  %565 = vmatpush.msra.mxu0 0.0
  %566 = vmatpush.msra.mxu0 0.0
  %567 = vmatpush.msra.mxu0 0.0
  %568 = vmatpush.msra.mxu0 0.0
  %569 = vmatpush.msra.mxu0 0.0
  %570 = vmatpush.msra.mxu0 0.0
  %571 = vmatpush.msra.mxu0 0.0
  %572 = vmatpush.msra.mxu0 0.0
  %573 = vmatpush.msra.mxu0 0.0
  %574 = vmatpush.msra.mxu0 %v554
  %575 = vmatmul.f32.gmra.mxu0 %v557
  %v576 = vpop.f32.mrf.mxu0
  %v577 = vadd.f32 0.0, %v576
  %578 = vdwg.mxu0
  %579 = vrot.lane.b32.xlu0 %v60, 104
  %v580 = vpop.permute.xlu0 %579
  %581 = vrot.lane.b32.xlu0 %v60, 72
  %v582 = vpop.permute.xlu0 %581
  %v583 = vsel %vm65, %v580, 0
  %v585 = vsel %vm65, %v582, 0
  %587 = vmatpush.xpose.msra.mxu0 0.0
  %588 = vmatpush.xpose.msra.mxu0 0.0
  %589 = vmatpush.xpose.msra.mxu0 0.0
  %590 = vmatpush.xpose.msra.mxu0 0.0
  %591 = vmatpush.xpose.msra.mxu0 0.0
  %592 = vmatpush.xpose.msra.mxu0 0.0
  %593 = vmatpush.xpose.msra.mxu0 0.0
  %594 = vmatpush.xpose.msra.mxu0 0.0
  %595 = vmatpush.xpose.msra.mxu0 0.0
  %596 = vmatpush.xpose.msra.mxu0 0.0
  %597 = vmatpush.xpose.msra.mxu0 0.0
  %598 = vmatpush.xpose.msra.mxu0 0.0
  %599 = vmatpush.xpose.msra.mxu0 0.0
  %600 = vmatpush.xpose.msra.mxu0 0.0
  %601 = vmatpush.xpose.msra.mxu0 0.0
  %602 = vmatpush.xpose.msra.mxu0 %v585
  %603 = vmatmul.f32.gmra.mxu0 %v583
  %v604 = vpop.f32.mrf.mxu0
  %v605 = vadd.f32 0.0, %v604
  %606 = vdwg.mxu0
  %v607 = vsel %vm65, %v605, -inf
  %608 = vmax.xlane.f32.xlu0 %v607
  %v609 = vpop.xlane.xlu0 %608
  %v610 = vsub.f32 %v605, %v609
  %v611 = vmul.f32 %v610, 1.442695
  %v612 = vpow.pop %v611
  %v613 = vsel %vm65, %v612, 0.0
  %614 = vadd.xlane.f32.xlu0 %v613
  %v615 = vpop.xlane.xlu0 %614
  %v616 = vrcp.pop %v615
  %v617 = vmul.f32 %v612, %v616
  %v618 = vadd.f32 %v552, %v617
  %619 = vrot.lane.b32.xlu0 %v60, 40
  %v620 = vpop.permute.xlu0 %619
  %v623 = vsel %vm65, %v617, 0
  %625 = vmatpush.msra.mxu0 0.0
  %626 = vmatpush.msra.mxu0 0.0
  %627 = vmatpush.msra.mxu0 0.0
  %628 = vmatpush.msra.mxu0 0.0
  %629 = vmatpush.msra.mxu0 0.0
  %630 = vmatpush.msra.mxu0 0.0
  %631 = vmatpush.msra.mxu0 0.0
  %632 = vmatpush.msra.mxu0 0.0
  %633 = vmatpush.msra.mxu0 0.0
  %634 = vmatpush.msra.mxu0 0.0
  %635 = vmatpush.msra.mxu0 0.0
  %636 = vmatpush.msra.mxu0 0.0
  %637 = vmatpush.msra.mxu0 0.0
  %638 = vmatpush.msra.mxu0 0.0
  %639 = vmatpush.msra.mxu0 0.0
  %640 = vmatpush.msra.mxu0 %v620
  %641 = vmatmul.f32.gmra.mxu0 %v623
  %v642 = vpop.f32.mrf.mxu0
  %v643 = vadd.f32 0.0, %v642
  %644 = vdwg.mxu0
  %646 = vrot.lane.b32.xlu0 %v511, 8
  %v647 = vpop.permute.xlu0 %646
  %650 = vrot.lane.b32.xlu0 %v577, 16
  %v651 = vpop.permute.xlu0 %650
  %654 = vrot.lane.b32.xlu0 %v643, 24
  %v655 = vpop.permute.xlu0 %654
  %v657 = vsel %vm65, %v445, %v647
  %v658 = vsel %vm339, %v657, %v651
  %v659 = vsel %vm341, %v658, %v655
  %v661 = vsel %vm32, %v659, 0
  %663 = vmatpush.msra.mxu0 0.0
  %664 = vmatpush.msra.mxu0 0.0
  %665 = vmatpush.msra.mxu0 0.0
  %666 = vmatpush.msra.mxu0 0.0
  %667 = vmatpush.msra.mxu0 0.0
  %668 = vmatpush.msra.mxu0 0.0
  %669 = vmatpush.msra.mxu0 0.0
  %670 = vmatpush.msra.mxu0 0.0
  %671 = vmatpush.msra.mxu0 0.0
  %672 = vmatpush.msra.mxu0 0.0
  %673 = vmatpush.msra.mxu0 0.0
  %674 = vmatpush.msra.mxu0 0.0
  %675 = vmatpush.msra.mxu0 %v354
  %676 = vmatpush.msra.mxu0 %v352
  %677 = vmatpush.msra.mxu0 %v350
  %678 = vmatpush.msra.mxu0 %v348
  %679 = vmatmul.f32.gmra.mxu0 %v661
  %v680 = vpop.f32.mrf.mxu0
  %v681 = vadd.f32 0.0, %v680
  %682 = vdwg.mxu0
  %v684 = vrot.slane %v618, 7
  %vm686 = vcmask 1040384
  %v687 = vsel %vm686, %v299, %v684
  %v688 = vlaneseq
  %v689 = vand.u32 %v688, 127
  %s690 = sld [smem:[#allocation3]]
  %v691 = vstv %s690
  %vm692 = vcmp.eq.s32.totalorder %v689, %v691
  %v693 = vsel %vm692, 1, 0
  %v694 = vcvt.s32.f32 %v693
  %s695 = sld [smem:[#allocation3 + $0x1]]
  %s696 = sadd.s32 %s695, 8
  %v697 = vstv %s696
  %vm698 = vcmp.eq.s32.totalorder %v689, %v697
  %v699 = vsel %vm698, 1, 0
  %v700 = vcvt.s32.f32 %v699
  %v701 = vsel %vm686, %v694, %v700
  %v703 = vsel %vm339, %v701, 0
  %705 = vmatpush.msra.mxu0 0.0
  %706 = vmatpush.msra.mxu0 0.0
  %707 = vmatpush.msra.mxu0 0.0
  %708 = vmatpush.msra.mxu0 0.0
  %709 = vmatpush.msra.mxu0 0.0
  %710 = vmatpush.msra.mxu0 0.0
  %711 = vmatpush.msra.mxu0 0.0
  %712 = vmatpush.msra.mxu0 0.0
  %713 = vmatpush.msra.mxu0 0.0
  %714 = vmatpush.msra.mxu0 0.0
  %715 = vmatpush.msra.mxu0 0.0
  %716 = vmatpush.msra.mxu0 0.0
  %717 = vmatpush.msra.mxu0 0.0
  %718 = vmatpush.msra.mxu0 0.0
  %719 = vmatpush.msra.mxu0 %v681
  %720 = vmatpush.msra.mxu0 %v380
  %721 = vmatmul.f32.gmra.mxu0 %v703
  %v722 = vpop.f32.mrf.mxu0
  %v723 = vadd.f32 0.0, %v722
  %724 = vdwg.mxu0
  %v725 = vld [vmem:[%s3] sm:$0xff]
  %v726 = vld [vmem:[%s3 + $0x8] sm:$0xff]
  %v727 = vld [vmem:[%s3 + $0x10] sm:$0xff]
  %v728 = vld [vmem:[%s3 + $0x18] sm:$0xff]
  %v729 = vld [vmem:[%s3 + $0x20] sm:$0x1]
  %v730 = vperm.slane %v729, 0
  %v732 = vsel %vm32, %v723, 0
  %734 = vmatpush.msra.mxu0 0.0
  %735 = vmatpush.msra.mxu0 0.0
  %736 = vmatpush.msra.mxu0 0.0
  %737 = vmatpush.msra.mxu0 0.0
  %738 = vmatpush.msra.mxu0 0.0
  %739 = vmatpush.msra.mxu0 0.0
  %740 = vmatpush.msra.mxu0 0.0
  %741 = vmatpush.msra.mxu0 0.0
  %742 = vmatpush.msra.mxu0 0.0
  %743 = vmatpush.msra.mxu0 0.0
  %744 = vmatpush.msra.mxu0 0.0
  %745 = vmatpush.msra.mxu0 0.0
  %746 = vmatpush.msra.mxu0 %v728
  %747 = vmatpush.msra.mxu0 %v727
  %748 = vmatpush.msra.mxu0 %v726
  %749 = vmatpush.msra.mxu0 %v725
  %750 = vmatmul.f32.gmra.mxu0 %v732
  %v751 = vpop.f32.mrf.mxu0
  %v752 = vadd.f32 %v730, %v751
  %753 = vdwg.mxu0
  %v754 = vmax.f32 %v752, 0.0
  %vm755 = vcmask 1041408
  %v756 = vsel %vm755, %v754, 0.0
  %v757 = vsel %vm755, %v687, 0.0
  %v758 = vld [vmem:[%s4] sm:$0xff]
  %v759 = vld [vmem:[%s4 + $0x8] sm:$0xff]
  %v760 = vld [vmem:[%s4 + $0x10] sm:$0xff]
  %v761 = vld [vmem:[%s4 + $0x18] sm:$0xff]
  %v762 = vld [vmem:[%s4 + $0x20] sm:$0xff]
  %v763 = vld [vmem:[%s4 + $0x28] sm:$0xff]
  %v764 = vld [vmem:[%s4 + $0x30] sm:$0xff]
  %v765 = vld [vmem:[%s4 + $0x38] sm:$0xff]
  %v766 = vld [vmem:[%s4 + $0x40] sm:$0xff]
  %v767 = vld [vmem:[%s4 + $0x48] sm:$0xff]
  %v768 = vld [vmem:[%s4 + $0x50] sm:$0xff]
  %v769 = vld [vmem:[%s4 + $0x58] sm:$0xff]
  %v770 = vld [vmem:[%s4 + $0x60] sm:$0xff]
  %v771 = vld [vmem:[%s4 + $0x68] sm:$0xff]
  %v772 = vld [vmem:[%s4 + $0x70] sm:$0xff]
  %v773 = vld [vmem:[%s4 + $0x78] sm:$0xff]
  %v774 = vld [vmem:[%s4 + $0x80] sm:$0xff]
  %v775 = vld [vmem:[%s4 + $0x88] sm:$0x1]
  %v776 = vperm.slane %v775, 0
  %v778 = vsel %vm65, %v757, 0
  %780 = vmatpush.msra.mxu0 %v773
  %781 = vmatpush.msra.mxu0 %v772
  %782 = vmatpush.msra.mxu0 %v771
  %783 = vmatpush.msra.mxu0 %v770
  %784 = vmatpush.msra.mxu0 %v769
  %785 = vmatpush.msra.mxu0 %v768
  %786 = vmatpush.msra.mxu0 %v767
  %787 = vmatpush.msra.mxu0 %v766
  %788 = vmatpush.msra.mxu0 %v765
  %789 = vmatpush.msra.mxu0 %v764
  %790 = vmatpush.msra.mxu0 %v763
  %791 = vmatpush.msra.mxu0 %v762
  %792 = vmatpush.msra.mxu0 %v761
  %793 = vmatpush.msra.mxu0 %v760
  %794 = vmatpush.msra.mxu0 %v759
  %795 = vmatpush.msra.mxu0 %v758
  %796 = vmatmul.f32.gmra.mxu0 %v756
  %v797 = vpop.f32.mrf.mxu0
  %v798 = vadd.f32 %v776, %v797
  %799 = vdwg.mxu0
  %800 = vmatpush.msra.mxu0 0.0
  %801 = vmatpush.msra.mxu0 0.0
  %802 = vmatpush.msra.mxu0 0.0
  %803 = vmatpush.msra.mxu0 0.0
  %804 = vmatpush.msra.mxu0 0.0
  %805 = vmatpush.msra.mxu0 0.0
  %806 = vmatpush.msra.mxu0 0.0
  %807 = vmatpush.msra.mxu0 0.0
  %808 = vmatpush.msra.mxu0 0.0
  %809 = vmatpush.msra.mxu0 0.0
  %810 = vmatpush.msra.mxu0 0.0
  %811 = vmatpush.msra.mxu0 0.0
  %812 = vmatpush.msra.mxu0 0.0
  %813 = vmatpush.msra.mxu0 0.0
  %814 = vmatpush.msra.mxu0 0.0
  %815 = vmatpush.msra.mxu0 %v774
  %816 = vmatmul.f32.gmra.mxu0 %v778
  %v817 = vpop.f32.mrf.mxu0
  %v818 = vadd.f32 %v798, %v817
  %819 = vdwg.mxu0
  %820 = vst [vmem:[%s5] sm:$0xff] %v818
  // Predicated region
  $region18: #{bert_rel_simple_forward.1} parent=0 // pred_check
    _
  $region19: #{bert_rel_simple_forward.1} parent=0 // pred_check_branch
    %822 = sbr.rel (0) target = $region21
  $region20: #{bert_rel_simple_forward.1} parent=0 // pred_region
    _
  $region21: #{bert_rel_simple_forward.1} parent=0 // pred_fallthru
    _
  // Predicated region
  $region22: #{bert_rel_simple_forward.1} parent=0 // pred_check
    _
  $region23: #{bert_rel_simple_forward.1} parent=0 // pred_check_branch
    %824 = sbr.rel (0) target = $region25
  $region24: #{bert_rel_simple_forward.1} parent=0 // pred_region
    _
  $region25: #{bert_rel_simple_forward.1} parent=0 // pred_fallthru
    _

</llo_original>
